<compile_context>
chip_gen: v6e
topology: v6e:2x2x1
jax: 0.10.0
libtpu: 0.0.40
codegen_flags: <defaults>
</compile_context>

<pallas_src>
import functools

import jax
import jax.numpy as jnp
from jax import lax
from jax.experimental import pallas as pl
from jax.experimental.pallas import tpu as pltpu


def _round_up(a, b):
    return (a + b - 1) // b * b


def _sublane_step(dtype):
    # Minimum second-to-last tile dim per dtype packing: f32 -> 8, bf16 -> 16,
    # int8/fp8 -> 32.
    return max(8, 32 // jnp.dtype(dtype).itemsize)


_K_FULL_MAX = 8192          # full-K (no reduction grid axis) up to this K
_VMEM_BUDGET = 40 << 20     # double-buffered working set target (v7x-safe)


# ----------------------------------------------------------------------------
# Kernels
# ----------------------------------------------------------------------------
def _matmul_bias_kernel(a_ref, b_ref, bias_ref, o_ref):
    """Full-K: one dot per (i, j) tile, direct store, no scratch."""
    acc = jnp.dot(a_ref[...], b_ref[...], preferred_element_type=jnp.float32)
    o_ref[...] = (acc + bias_ref[...].astype(jnp.float32)).astype(o_ref.dtype)


def _matmul_bias_ksplit_kernel(a_ref, b_ref, bias_ref, o_ref, acc_ref):
    """Fallback for very large K: grid-level reduction with f32 accumulator."""
    @pl.when(pl.program_id(2) == 0)
    def _init():
        # Fold the bias into the accumulator init (no separate add at the end).
        acc_ref[...] = jnp.broadcast_to(
            bias_ref[...].astype(jnp.float32), acc_ref.shape)

    acc_ref[...] += jnp.dot(a_ref[...], b_ref[...],
                            preferred_element_type=jnp.float32)

    @pl.when(pl.program_id(2) == pl.num_programs(2) - 1)
    def _finalize():
        o_ref[...] = acc_ref[...].astype(o_ref.dtype)


# ----------------------------------------------------------------------------
# Tiled matmul + bias wrapper
# ----------------------------------------------------------------------------
def _matmul_bias(a, b, bias):
    """a: (M, K), b: (K, E), bias: (1, E) -> (M, E)."""
    M, K = a.shape
    _, E = b.shape
    itemsize = jnp.dtype(a.dtype).itemsize
    step_m = _sublane_step(a.dtype)

    # Lane tile for E: full-dim blocks are always legal (even when E is not a
    # multiple of 128); only very wide, 128-aligned E gets split.
    if E <= 1024 or E % 128 != 0:
        tn = E
    else:
        tn = 128
        for cand in (512, 384, 256):
            if E % cand == 0:
                tn = cand
                break

    if K <= _K_FULL_MAX:
        # ---------------- full-K path (covers all PoolFormer shapes) --------
        tm = min(512, _round_up(M, step_m))

        def vmem_bytes(tm_):
            # double-buffered A / B / bias / out blocks
            return 2 * (tm_ * K + K * tn + tn + tm_ * tn) * itemsize

        while tm > 2 * step_m and vmem_bytes(tm) > _VMEM_BUDGET:
            tm = max(2 * step_m, _round_up(tm // 2, step_m))

        grid_m = pl.cdiv(M, tm)
        grid_n = pl.cdiv(E, tn)

        # With grid_n == 1 (the common case) the B block index never changes,
        # so Pallas DMAs the weight matrix exactly once and it stays resident.
        b_fetches = grid_m if grid_n > 1 else 1
        cost = pl.CostEstimate(
            flops=2 * M * K * E,
            transcendentals=0,
            bytes_accessed=int((M * K + b_fetches * K * E + E) * itemsize
                               + M * E * itemsize),
        )
        vmem_limit = int(min(48 << 20, max(vmem_bytes(tm) + (4 << 20), 16 << 20)))

        return pl.pallas_call(
            _matmul_bias_kernel,
            out_shape=jax.ShapeDtypeStruct((M, E), a.dtype),
            grid_spec=pltpu.PrefetchScalarGridSpec(
                num_scalar_prefetch=0,
                grid=(grid_m, grid_n),
                in_specs=[
                    pl.BlockSpec((tm, K), lambda i, j: (i, 0)),
                    pl.BlockSpec((K, tn), lambda i, j: (0, j)),
                    pl.BlockSpec((1, tn), lambda i, j: (0, j)),
                ],
                out_specs=pl.BlockSpec((tm, tn), lambda i, j: (i, j)),
            ),
            compiler_params=pltpu.CompilerParams(
                dimension_semantics=("parallel", "parallel"),
                vmem_limit_bytes=vmem_limit),
            cost_estimate=cost,
        )(a, b, bias)

    # ---------------- K-split fallback (K > 8192; not hit by PatchEmbed) ----
    tm = min(256, _round_up(M, step_m))
    tk = min(2048, _round_up(K, 128))
    Mp, Kp = _round_up(M, tm), _round_up(K, tk)
    # K padding must be real zeros (garbage would contaminate the reduction).
    a_p = jnp.pad(a, ((0, Mp - M), (0, Kp - K)))
    b_p = jnp.pad(b, ((0, Kp - K), (0, 0)))
    grid = (Mp // tm, pl.cdiv(E, tn), Kp // tk)
    cost = pl.CostEstimate(
        flops=2 * Mp * Kp * E,
        transcendentals=0,
        bytes_accessed=int((Mp * Kp + grid[0] * Kp * E + E) * itemsize
                           + Mp * E * itemsize),
    )
    out = pl.pallas_call(
        _matmul_bias_ksplit_kernel,
        out_shape=jax.ShapeDtypeStruct((Mp, E), a.dtype),
        grid_spec=pltpu.PrefetchScalarGridSpec(
            num_scalar_prefetch=0,
            grid=grid,
            in_specs=[
                pl.BlockSpec((tm, tk), lambda i, j, k: (i, k)),
                pl.BlockSpec((tk, tn), lambda i, j, k: (k, j)),
                pl.BlockSpec((1, tn), lambda i, j, k: (0, j)),
            ],
            out_specs=pl.BlockSpec((tm, tn), lambda i, j, k: (i, j)),
            scratch_shapes=[pltpu.VMEM((tm, tn), jnp.float32)],
        ),
        compiler_params=pltpu.CompilerParams(
            dimension_semantics=("parallel", "parallel", "arbitrary"),
            vmem_limit_bytes=int(48 << 20)),
        cost_estimate=cost,
    )(a_p, b_p, bias)
    return out[:M]


# ----------------------------------------------------------------------------
# PatchEmbed.forward
# ----------------------------------------------------------------------------
@functools.partial(jax.jit, static_argnames=("stride", "padding", "channels_last"))
def patch_embed(x, weight, bias, *, stride, padding, channels_last=False):
    """x: (N, C, H, W), weight: (E, C, P, P), bias: (E,) -> (N, E, Ho, Wo).

    Set channels_last=True to get the lane-dense (N, Ho, Wo, E) slab directly
    and skip the final NCHW transpose (an extra HBM pass) when the consumer
    accepts channels-last.
    """
    N, C, H, W = x.shape
    E, Cw, P, Pw = weight.shape
    assert C == Cw and P == Pw
    Ho = (H + 2 * padding - P) // stride + 1
    Wo = (W + 2 * padding - P) // stride + 1

    # --- im2col (layout plumbing; all heavy compute is the Pallas matmul) ---
    if stride == P and padding == 0 and H % P == 0 and W % P == 0:
        # Non-overlapping fast path (module defaults: patch=stride, pad=0).
        patches = x.reshape(N, C, Ho, P, Wo, P).transpose(0, 2, 4, 1, 3, 5)
        a = patches.reshape(N * Ho * Wo, C * P * P)
    else:
        # General overlapping / padded case (e.g. PoolFormer stem 7/4/2).
        # TODO(synk): this still materializes the P*P-expanded im2col tensor in
        # HBM; an in-kernel (kh, kw) gather from x kept in pl.ANY via manual
        # DMA would remove that extra HBM pass for the overlapping stem.
        xp = jnp.pad(x, ((0, 0), (0, 0), (padding, padding), (padding, padding)))
        cols = []
        for kh in range(P):
            for kw in range(P):
                sl = lax.slice(
                    xp, (0, 0, kh, kw),
                    (N, C, kh + (Ho - 1) * stride + 1, kw + (Wo - 1) * stride + 1),
                    (1, 1, stride, stride))                 # (N, C, Ho, Wo)
                cols.append(sl)
        patches = jnp.stack(cols, axis=-1)                  # (N, C, Ho, Wo, P*P)
        patches = patches.transpose(0, 2, 3, 1, 4)          # (N, Ho, Wo, C, P*P)
        a = patches.reshape(N * Ho * Wo, C * P * P)

    bmat = weight.reshape(E, C * P * P).T                   # (K, E), same K order
    out2d = _matmul_bias(a, bmat, bias.reshape(1, E))       # (M, E), lane-dense
    out = out2d.reshape(N, Ho, Wo, E)
    if channels_last:
        return out
    return out.transpose(0, 3, 1, 2)                        # NCHW like nn.Conv2d


# ----------------------------------------------------------------------------
# Pure-JAX reference (matches PyTorch nn.Conv2d semantics)
# ----------------------------------------------------------------------------
def _reference(x, weight, bias, *, stride, padding):
    out = lax.conv_general_dilated(
        x.astype(jnp.float32), weight.astype(jnp.float32),
        window_strides=(stride, stride),
        padding=[(padding, padding), (padding, padding)],
        dimension_numbers=("NCHW", "OIHW", "NCHW"),
        precision=lax.Precision.HIGHEST)
    return (out + bias.astype(jnp.float32).reshape(1, -1, 1, 1)).astype(x.dtype)


if __name__ == "__main__":
    key = jax.random.PRNGKey(0)

    # --- Test 1: module defaults (patch 16, stride 16, pad 0), fast path ---
    kx, kw, kb = jax.random.split(key, 3)
    N, C, H, W = 2, 3, 32, 32
    P, STRIDE, PAD, E = 16, 16, 0, 128
    x = jax.random.normal(kx, (N, C, H, W), dtype=jnp.float32)
    weight = jax.random.normal(kw, (E, C, P, P), dtype=jnp.float32) * 0.02
    bias = jax.random.normal(kb, (E,), dtype=jnp.float32) * 0.02

    out = patch_embed(x, weight, bias, stride=STRIDE, padding=PAD,
                      channels_last=False)
    jax.block_until_ready(out)
    ref = _reference(x, weight, bias, stride=STRIDE, padding=PAD)
    assert out.shape == (N, E, H // P, W // P), out.shape
    assert out.dtype == x.dtype
    assert jnp.allclose(out, ref, atol=5e-2, rtol=5e-2), \
        float(jnp.max(jnp.abs(out - ref)))

    # --- Test 2: overlapping PoolFormer-style stem (7 / 4 / 2), general path ---
    kx2, kw2, kb2 = jax.random.split(jax.random.PRNGKey(1), 3)
    N2, C2, H2, W2 = 1, 3, 16, 16
    P2, STRIDE2, PAD2, E2 = 7, 4, 2, 64
    x2 = jax.random.normal(kx2, (N2, C2, H2, W2), dtype=jnp.float32)
    w2 = jax.random.normal(kw2, (E2, C2, P2, P2), dtype=jnp.float32) * 0.02
    b2 = jax.random.normal(kb2, (E2,), dtype=jnp.float32) * 0.02

    out2 = patch_embed(x2, w2, b2, stride=STRIDE2, padding=PAD2,
                       channels_last=False)
    jax.block_until_ready(out2)
    ref2 = _reference(x2, w2, b2, stride=STRIDE2, padding=PAD2)
    assert out2.shape == ref2.shape, (out2.shape, ref2.shape)
    assert jnp.allclose(out2, ref2, atol=5e-2, rtol=5e-2), \
        float(jnp.max(jnp.abs(out2 - ref2)))

    print("KERNEL_OK")
</pallas_src>

<mosaic_0001>
module attributes {stable_mosaic.version = 11 : i64} {
  func.func @_matmul_bias_kernel(%arg0: i32, %arg1: i32, %arg2: memref<8x768xf32, #tpu.memory_space<vmem>>, %arg3: memref<768x128xf32, #tpu.memory_space<vmem>>, %arg4: memref<1x128xf32, #tpu.memory_space<vmem>>, %arg5: memref<8x128xf32, #tpu.memory_space<vmem>>) attributes {dimension_semantics = [#tpu.dimension_semantics<parallel>, #tpu.dimension_semantics<parallel>], iteration_bounds = array<i64: 1, 1>, scalar_prefetch = 0 : i64, scratch_operands = 0 : i64, tpu.core_type = #tpu.core_type<tc>, window_params = [{transform_indices = @transform_0, window_bounds = array<i64: 8, 768>}, {transform_indices = @transform_1, window_bounds = array<i64: 768, 128>}, {transform_indices = @transform_2, window_bounds = array<i64: 1, 128>}, {transform_indices = @transform_3, window_bounds = array<i64: 8, 128>}]} {
    %c0 = arith.constant 0 : index
    %c0_0 = arith.constant 0 : index
    %0 = vector.load %arg2[%c0, %c0_0] : memref<8x768xf32, #tpu.memory_space<vmem>>, vector<8x768xf32>
    %c0_1 = arith.constant 0 : index
    %c0_2 = arith.constant 0 : index
    %1 = vector.load %arg3[%c0_1, %c0_2] : memref<768x128xf32, #tpu.memory_space<vmem>>, vector<768x128xf32>
    %cst = arith.constant dense<0.000000e+00> : vector<8x128xf32>
    %2 = tpu.matmul %0, %1, %cst {dimension_numbers = #tpu.dot_dimension_numbers<[1], [0], [0], [1], [0, 0, 1, 1], [], []>} : vector<8x768xf32>, vector<768x128xf32>, vector<8x128xf32> -> vector<8x128xf32>
    %c0_3 = arith.constant 0 : index
    %c0_4 = arith.constant 0 : index
    %3 = vector.load %arg4[%c0_3, %c0_4] : memref<1x128xf32, #tpu.memory_space<vmem>>, vector<1x128xf32>
    %4 = vector.broadcast %3 : vector<1x128xf32> to vector<8x128xf32>
    %5 = arith.addf %2, %4 : vector<8x128xf32>
    %c0_5 = arith.constant 0 : index
    %c0_6 = arith.constant 0 : index
    %6 = vector.load %arg5[%c0_5, %c0_6] : memref<8x128xf32, #tpu.memory_space<vmem>>, vector<8x128xf32>
    tpu.vector_store %arg5[%c0_5, %c0_6], %5 {strides = array<i32>} : memref<8x128xf32, #tpu.memory_space<vmem>>, vector<8x128xf32>,
    return
  }
  func.func @transform_0(%arg0: i32, %arg1: i32) -> (i32, i32) {
    %c0_i32 = arith.constant 0 : i32
    %c0_i32_0 = arith.constant 0 : i32
    return %arg0, %c0_i32 : i32, i32
  }
  func.func @transform_1(%arg0: i32, %arg1: i32) -> (i32, i32) {
    %c0_i32 = arith.constant 0 : i32
    %c0_i32_0 = arith.constant 0 : i32
    return %c0_i32, %arg1 : i32, i32
  }
  func.func @transform_2(%arg0: i32, %arg1: i32) -> (i32, i32) {
    %c0_i32 = arith.constant 0 : i32
    %c0_i32_0 = arith.constant 0 : i32
    return %c0_i32, %arg1 : i32, i32
  }
  func.func @transform_3(%arg0: i32, %arg1: i32) -> (i32, i32) {
    %c0_i32 = arith.constant 0 : i32
    return %arg0, %arg1 : i32, i32
  }
}

</mosaic_0001>

<llo_original>
// kernel: patch_embed.1
$region0: #{patch_embed.1}
  #allocation0 [shape = 'u32[]', space=smem, size = 0x4, offset = 0x4, fixed_abs, tag = 'smem constant byte address 0x4 - core index']
  #allocation1 [shape = 'u32[144,128]{1,0:T(1,128)}', space=vmem, size = 0x12000, scoped, tag = 'internal scratch']
  %s0 = inlined_call_operand.vmem [shape: f32[8,768], index: 0, kind: input, shape index: {}]
  %s1 = inlined_call_operand.vmem [shape: f32[768,128], index: 1, kind: input, shape index: {}]
  %s2 = inlined_call_operand.vmem [shape: f32[1,128], index: 2, kind: input, shape index: {}]
  %s3 = inlined_call_operand.hbm [shape: f32[8,128], index: 3, kind: output, shape index: {}]
  %s4 = sld [smem:[#allocation0]]
  $region22: #{patch_embed.1} parent=0
    _
  %s6 = ssub.s32 1, %s4
  %s7 = scalar_select 0, %s6, %s4
  $region1: #{patch_embed.1} parent=0
    #allocation2 [shape = 'u8[4096]{0}', space=vmem, size = 0x1000, scoped, tag = 'output window, operand 0, single buffered']
    #allocation3 [shape = 's32[1]{0}', space=sflag, size = 0x4, scoped, tag = 'scoped memory for patch_embed.1']
    %8 = vsyncpa [#allocation3], 0
    // Predicated region
    $region2: #{patch_embed.1} parent=1 // pred_check
      _
    $region3: #{patch_embed.1} parent=1 // pred_check_branch
      %10 = sbr.rel (0) target = $region5
    $region4: #{patch_embed.1} parent=1 // pred_region
      _
    $region5: #{patch_embed.1} parent=1 // pred_fallthru
      _
    // Predicated region
    $region6: #{patch_embed.1} parent=1 // pred_check
      _
    $region7: #{patch_embed.1} parent=1 // pred_check_branch
      %12 = sbr.rel (0) target = $region9
    $region8: #{patch_embed.1} parent=1 // pred_region
      _
    $region9: #{patch_embed.1} parent=1 // pred_fallthru
      _
    // Predicated region
    $region10: #{patch_embed.1} parent=1 // pred_check
      _
    $region11: #{patch_embed.1} parent=1 // pred_check_branch
      %14 = sbr.rel (0) target = $region13
    $region12: #{patch_embed.1} parent=1 // pred_region
      _
    $region13: #{patch_embed.1} parent=1 // pred_fallthru
      _
    %v15 = vld [vmem:[%s0] sm:$0xff]
    %v16 = vld [vmem:[%s0 + $0x8] sm:$0xff]
    %v17 = vld [vmem:[%s0 + $0x10] sm:$0xff]
    %v18 = vld [vmem:[%s0 + $0x18] sm:$0xff]
    %v19 = vld [vmem:[%s0 + $0x20] sm:$0xff]
    %v20 = vld [vmem:[%s0 + $0x28] sm:$0xff]
    %v21 = vld [vmem:[%s1] sm:$0xff]
    %v22 = vld [vmem:[%s1 + $0x8] sm:$0xff]
    %v23 = vld [vmem:[%s1 + $0x10] sm:$0xff]
    %v24 = vld [vmem:[%s1 + $0x18] sm:$0xff]
    %v25 = vld [vmem:[%s1 + $0x20] sm:$0xff]
    %v26 = vld [vmem:[%s1 + $0x28] sm:$0xff]
    %v27 = vld [vmem:[%s1 + $0x30] sm:$0xff]
    %v28 = vld [vmem:[%s1 + $0x38] sm:$0xff]
    %v29 = vld [vmem:[%s1 + $0x40] sm:$0xff]
    %v30 = vld [vmem:[%s1 + $0x48] sm:$0xff]
    %v31 = vld [vmem:[%s1 + $0x50] sm:$0xff]
    %v32 = vld [vmem:[%s1 + $0x58] sm:$0xff]
    %v33 = vld [vmem:[%s1 + $0x60] sm:$0xff]
    %v34 = vld [vmem:[%s1 + $0x68] sm:$0xff]
    %v35 = vld [vmem:[%s1 + $0x70] sm:$0xff]
    %v36 = vld [vmem:[%s1 + $0x78] sm:$0xff]
    %v37 = vld [vmem:[%s1 + $0x80] sm:$0xff]
    %v38 = vld [vmem:[%s1 + $0x88] sm:$0xff]
    %v39 = vld [vmem:[%s1 + $0x90] sm:$0xff]
    %v40 = vld [vmem:[%s1 + $0x98] sm:$0xff]
    %v41 = vld [vmem:[%s1 + $0xa0] sm:$0xff]
    %v42 = vld [vmem:[%s1 + $0xa8] sm:$0xff]
    %v43 = vld [vmem:[%s1 + $0xb0] sm:$0xff]
    %v44 = vld [vmem:[%s1 + $0xb8] sm:$0xff]
    %v45 = vld [vmem:[%s1 + $0xc0] sm:$0xff]
    %v46 = vld [vmem:[%s1 + $0xc8] sm:$0xff]
    %v47 = vld [vmem:[%s1 + $0xd0] sm:$0xff]
    %v48 = vld [vmem:[%s1 + $0xd8] sm:$0xff]
    %v49 = vld [vmem:[%s1 + $0xe0] sm:$0xff]
    %v50 = vld [vmem:[%s1 + $0xe8] sm:$0xff]
    %v51 = vld [vmem:[%s1 + $0xf0] sm:$0xff]
    %v52 = vld [vmem:[%s1 + $0xf8] sm:$0xff]
    %v53 = vld [vmem:[%s1 + $0x100] sm:$0xff]
    %v54 = vld [vmem:[%s1 + $0x108] sm:$0xff]
    %v55 = vld [vmem:[%s1 + $0x110] sm:$0xff]
    %v56 = vld [vmem:[%s1 + $0x118] sm:$0xff]
    %v57 = vld [vmem:[%s1 + $0x120] sm:$0xff]
    %v58 = vld [vmem:[%s1 + $0x128] sm:$0xff]
    %v59 = vld [vmem:[%s1 + $0x130] sm:$0xff]
    %v60 = vld [vmem:[%s1 + $0x138] sm:$0xff]
    %v61 = vld [vmem:[%s1 + $0x140] sm:$0xff]
    %v62 = vld [vmem:[%s1 + $0x148] sm:$0xff]
    %v63 = vld [vmem:[%s1 + $0x150] sm:$0xff]
    %v64 = vld [vmem:[%s1 + $0x158] sm:$0xff]
    %v65 = vld [vmem:[%s1 + $0x160] sm:$0xff]
    %v66 = vld [vmem:[%s1 + $0x168] sm:$0xff]
    %v67 = vld [vmem:[%s1 + $0x170] sm:$0xff]
    %v68 = vld [vmem:[%s1 + $0x178] sm:$0xff]
    %v69 = vld [vmem:[%s1 + $0x180] sm:$0xff]
    %v70 = vld [vmem:[%s1 + $0x188] sm:$0xff]
    %v71 = vld [vmem:[%s1 + $0x190] sm:$0xff]
    %v72 = vld [vmem:[%s1 + $0x198] sm:$0xff]
    %v73 = vld [vmem:[%s1 + $0x1a0] sm:$0xff]
    %v74 = vld [vmem:[%s1 + $0x1a8] sm:$0xff]
    %v75 = vld [vmem:[%s1 + $0x1b0] sm:$0xff]
    %v76 = vld [vmem:[%s1 + $0x1b8] sm:$0xff]
    %v77 = vld [vmem:[%s1 + $0x1c0] sm:$0xff]
    %v78 = vld [vmem:[%s1 + $0x1c8] sm:$0xff]
    %v79 = vld [vmem:[%s1 + $0x1d0] sm:$0xff]
    %v80 = vld [vmem:[%s1 + $0x1d8] sm:$0xff]
    %v81 = vld [vmem:[%s1 + $0x1e0] sm:$0xff]
    %v82 = vld [vmem:[%s1 + $0x1e8] sm:$0xff]
    %v83 = vld [vmem:[%s1 + $0x1f0] sm:$0xff]
    %v84 = vld [vmem:[%s1 + $0x1f8] sm:$0xff]
    %v85 = vld [vmem:[%s1 + $0x200] sm:$0xff]
    %v86 = vld [vmem:[%s1 + $0x208] sm:$0xff]
    %v87 = vld [vmem:[%s1 + $0x210] sm:$0xff]
    %v88 = vld [vmem:[%s1 + $0x218] sm:$0xff]
    %v89 = vld [vmem:[%s1 + $0x220] sm:$0xff]
    %v90 = vld [vmem:[%s1 + $0x228] sm:$0xff]
    %v91 = vld [vmem:[%s1 + $0x230] sm:$0xff]
    %v92 = vld [vmem:[%s1 + $0x238] sm:$0xff]
    %v93 = vld [vmem:[%s1 + $0x240] sm:$0xff]
    %v94 = vld [vmem:[%s1 + $0x248] sm:$0xff]
    %v95 = vld [vmem:[%s1 + $0x250] sm:$0xff]
    %v96 = vld [vmem:[%s1 + $0x258] sm:$0xff]
    %v97 = vld [vmem:[%s1 + $0x260] sm:$0xff]
    %v98 = vld [vmem:[%s1 + $0x268] sm:$0xff]
    %v99 = vld [vmem:[%s1 + $0x270] sm:$0xff]
    %v100 = vld [vmem:[%s1 + $0x278] sm:$0xff]
    %v101 = vld [vmem:[%s1 + $0x280] sm:$0xff]
    %v102 = vld [vmem:[%s1 + $0x288] sm:$0xff]
    %v103 = vld [vmem:[%s1 + $0x290] sm:$0xff]
    %v104 = vld [vmem:[%s1 + $0x298] sm:$0xff]
    %v105 = vld [vmem:[%s1 + $0x2a0] sm:$0xff]
    %v106 = vld [vmem:[%s1 + $0x2a8] sm:$0xff]
    %v107 = vld [vmem:[%s1 + $0x2b0] sm:$0xff]
    %v108 = vld [vmem:[%s1 + $0x2b8] sm:$0xff]
    %v109 = vld [vmem:[%s1 + $0x2c0] sm:$0xff]
    %v110 = vld [vmem:[%s1 + $0x2c8] sm:$0xff]
    %v111 = vld [vmem:[%s1 + $0x2d0] sm:$0xff]
    %v112 = vld [vmem:[%s1 + $0x2d8] sm:$0xff]
    %v113 = vld [vmem:[%s1 + $0x2e0] sm:$0xff]
    %v114 = vld [vmem:[%s1 + $0x2e8] sm:$0xff]
    %v115 = vld [vmem:[%s1 + $0x2f0] sm:$0xff]
    %v116 = vld [vmem:[%s1 + $0x2f8] sm:$0xff]
    %v117 = vld [vmem:[%s2] sm:$0x1]
    %v119 = vlaneseq
    %v120 = vshrl.u32 %v119, 7
    %v121 = vsub.s32 0, %v120
    %v122 = vrot.slane %v117, %v121
    %124 = vmatprep.subr.mxu0 0.0
    %125 = vmatpush1.msra.mxu0 %v36
    %126 = vmatprep.subr.mxu0 0.0
    %127 = vmatpush1.msra.mxu0 %v35
    %128 = vmatprep.subr.mxu0 0.0
    %129 = vmatpush1.msra.mxu0 %v34
    %130 = vmatprep.subr.mxu0 0.0
    %131 = vmatpush1.msra.mxu0 %v33
    %132 = vmatprep.subr.mxu0 0.0
    %133 = vmatpush1.msra.mxu0 %v32
    %134 = vmatprep.subr.mxu0 0.0
    %135 = vmatpush1.msra.mxu0 %v31
    %136 = vmatprep.subr.mxu0 0.0
    %137 = vmatpush1.msra.mxu0 %v30
    %138 = vmatprep.subr.mxu0 0.0
    %139 = vmatpush1.msra.mxu0 %v29
    %140 = vmatprep.subr.mxu0 0.0
    %141 = vmatpush1.msra.mxu0 %v28
    %142 = vmatprep.subr.mxu0 0.0
    %143 = vmatpush1.msra.mxu0 %v27
    %144 = vmatprep.subr.mxu0 0.0
    %145 = vmatpush1.msra.mxu0 %v26
    %146 = vmatprep.subr.mxu0 0.0
    %147 = vmatpush1.msra.mxu0 %v25
    %148 = vmatprep.subr.mxu0 0.0
    %149 = vmatpush1.msra.mxu0 %v24
    %150 = vmatprep.subr.mxu0 0.0
    %151 = vmatpush1.msra.mxu0 %v23
    %152 = vmatprep.subr.mxu0 0.0
    %153 = vmatpush1.msra.mxu0 %v22
    %154 = vmatprep.subr.mxu0 0.0
    %155 = vmatpush1.msra.mxu0 %v21
    %156 = vmatprep.subr.mxu0 0.0
    %157 = vmatpush2.msra.mxu0 %v52
    %158 = vmatprep.subr.mxu0 0.0
    %159 = vmatpush2.msra.mxu0 %v51
    %160 = vmatprep.subr.mxu0 0.0
    %161 = vmatpush2.msra.mxu0 %v50
    %162 = vmatprep.subr.mxu0 0.0
    %163 = vmatpush2.msra.mxu0 %v49
    %164 = vmatprep.subr.mxu0 0.0
    %165 = vmatpush2.msra.mxu0 %v48
    %166 = vmatprep.subr.mxu0 0.0
    %167 = vmatpush2.msra.mxu0 %v47
    %168 = vmatprep.subr.mxu0 0.0
    %169 = vmatpush2.msra.mxu0 %v46
    %170 = vmatprep.subr.mxu0 0.0
    %171 = vmatpush2.msra.mxu0 %v45
    %172 = vmatprep.subr.mxu0 0.0
    %173 = vmatpush2.msra.mxu0 %v44
    %174 = vmatprep.subr.mxu0 0.0
    %175 = vmatpush2.msra.mxu0 %v43
    %176 = vmatprep.subr.mxu0 0.0
    %177 = vmatpush2.msra.mxu0 %v42
    %178 = vmatprep.subr.mxu0 0.0
    %179 = vmatpush2.msra.mxu0 %v41
    %180 = vmatprep.subr.mxu0 0.0
    %181 = vmatpush2.msra.mxu0 %v40
    %182 = vmatprep.subr.mxu0 0.0
    %183 = vmatpush2.msra.mxu0 %v39
    %184 = vmatprep.subr.mxu0 0.0
    %185 = vmatpush2.msra.mxu0 %v38
    %186 = vmatprep.subr.mxu0 0.0
    %187 = vmatpush2.msra.mxu0 %v37
    %188 = vmatprep.mubr.f32.mxu0 %v16
    %189 = vmatmul.mubr.f32.gmra.mxu0 %v15
    %v190 = vpop.f32.mrf.mxu0
    %v191 = vadd.f32 %v122, %v190
    %v192 = vpop.f32.mrf.mxu0
    %193 = vdwg.mxu0
    %194 = vmatprep.subr.mxu0 0.0
    %195 = vmatpush1.msra.mxu0 %v68
    %196 = vmatprep.subr.mxu0 0.0
    %197 = vmatpush1.msra.mxu0 %v67
    %198 = vmatprep.subr.mxu0 0.0
    %199 = vmatpush1.msra.mxu0 %v66
    %200 = vmatprep.subr.mxu0 0.0
    %201 = vmatpush1.msra.mxu0 %v65
    %202 = vmatprep.subr.mxu0 0.0
    %203 = vmatpush1.msra.mxu0 %v64
    %204 = vmatprep.subr.mxu0 0.0
    %205 = vmatpush1.msra.mxu0 %v63
    %206 = vmatprep.subr.mxu0 0.0
    %207 = vmatpush1.msra.mxu0 %v62
    %208 = vmatprep.subr.mxu0 0.0
    %209 = vmatpush1.msra.mxu0 %v61
    %210 = vmatprep.subr.mxu0 0.0
    %211 = vmatpush1.msra.mxu0 %v60
    %212 = vmatprep.subr.mxu0 0.0
    %213 = vmatpush1.msra.mxu0 %v59
    %214 = vmatprep.subr.mxu0 0.0
    %215 = vmatpush1.msra.mxu0 %v58
    %216 = vmatprep.subr.mxu0 0.0
    %217 = vmatpush1.msra.mxu0 %v57
    %218 = vmatprep.subr.mxu0 0.0
    %219 = vmatpush1.msra.mxu0 %v56
    %220 = vmatprep.subr.mxu0 0.0
    %221 = vmatpush1.msra.mxu0 %v55
    %222 = vmatprep.subr.mxu0 0.0
    %223 = vmatpush1.msra.mxu0 %v54
    %224 = vmatprep.subr.mxu0 0.0
    %225 = vmatpush1.msra.mxu0 %v53
    %226 = vmatprep.subr.mxu0 0.0
    %227 = vmatpush2.msra.mxu0 %v84
    %228 = vmatprep.subr.mxu0 0.0
    %229 = vmatpush2.msra.mxu0 %v83
    %230 = vmatprep.subr.mxu0 0.0
    %231 = vmatpush2.msra.mxu0 %v82
    %232 = vmatprep.subr.mxu0 0.0
    %233 = vmatpush2.msra.mxu0 %v81
    %234 = vmatprep.subr.mxu0 0.0
    %235 = vmatpush2.msra.mxu0 %v80
    %236 = vmatprep.subr.mxu0 0.0
    %237 = vmatpush2.msra.mxu0 %v79
    %238 = vmatprep.subr.mxu0 0.0
    %239 = vmatpush2.msra.mxu0 %v78
    %240 = vmatprep.subr.mxu0 0.0
    %241 = vmatpush2.msra.mxu0 %v77
    %242 = vmatprep.subr.mxu0 0.0
    %243 = vmatpush2.msra.mxu0 %v76
    %244 = vmatprep.subr.mxu0 0.0
    %245 = vmatpush2.msra.mxu0 %v75
    %246 = vmatprep.subr.mxu0 0.0
    %247 = vmatpush2.msra.mxu0 %v74
    %248 = vmatprep.subr.mxu0 0.0
    %249 = vmatpush2.msra.mxu0 %v73
    %250 = vmatprep.subr.mxu0 0.0
    %251 = vmatpush2.msra.mxu0 %v72
    %252 = vmatprep.subr.mxu0 0.0
    %253 = vmatpush2.msra.mxu0 %v71
    %254 = vmatprep.subr.mxu0 0.0
    %255 = vmatpush2.msra.mxu0 %v70
    %256 = vmatprep.subr.mxu0 0.0
    %257 = vmatpush2.msra.mxu0 %v69
    %258 = vmatprep.mubr.f32.mxu0 %v18
    %259 = vmatmul.mubr.f32.gmra.mxu0 %v17
    %v260 = vpop.f32.mrf.mxu0
    %v261 = vadd.f32 %v191, %v260
    %v262 = vpop.f32.mrf.mxu0
    %263 = vdwg.mxu0
    %264 = vmatprep.subr.mxu0 0.0
    %265 = vmatpush1.msra.mxu0 %v100
    %266 = vmatprep.subr.mxu0 0.0
    %267 = vmatpush1.msra.mxu0 %v99
    %268 = vmatprep.subr.mxu0 0.0
    %269 = vmatpush1.msra.mxu0 %v98
    %270 = vmatprep.subr.mxu0 0.0
    %271 = vmatpush1.msra.mxu0 %v97
    %272 = vmatprep.subr.mxu0 0.0
    %273 = vmatpush1.msra.mxu0 %v96
    %274 = vmatprep.subr.mxu0 0.0
    %275 = vmatpush1.msra.mxu0 %v95
    %276 = vmatprep.subr.mxu0 0.0
    %277 = vmatpush1.msra.mxu0 %v94
    %278 = vmatprep.subr.mxu0 0.0
    %279 = vmatpush1.msra.mxu0 %v93
    %280 = vmatprep.subr.mxu0 0.0
    %281 = vmatpush1.msra.mxu0 %v92
    %282 = vmatprep.subr.mxu0 0.0
    %283 = vmatpush1.msra.mxu0 %v91
    %284 = vmatprep.subr.mxu0 0.0
    %285 = vmatpush1.msra.mxu0 %v90
    %286 = vmatprep.subr.mxu0 0.0
    %287 = vmatpush1.msra.mxu0 %v89
    %288 = vmatprep.subr.mxu0 0.0
    %289 = vmatpush1.msra.mxu0 %v88
    %290 = vmatprep.subr.mxu0 0.0
    %291 = vmatpush1.msra.mxu0 %v87
    %292 = vmatprep.subr.mxu0 0.0
    %293 = vmatpush1.msra.mxu0 %v86
    %294 = vmatprep.subr.mxu0 0.0
    %295 = vmatpush1.msra.mxu0 %v85
    %296 = vmatprep.subr.mxu0 0.0
    %297 = vmatpush2.msra.mxu0 %v116
    %298 = vmatprep.subr.mxu0 0.0
    %299 = vmatpush2.msra.mxu0 %v115
    %300 = vmatprep.subr.mxu0 0.0
    %301 = vmatpush2.msra.mxu0 %v114
    %302 = vmatprep.subr.mxu0 0.0
    %303 = vmatpush2.msra.mxu0 %v113
    %304 = vmatprep.subr.mxu0 0.0
    %305 = vmatpush2.msra.mxu0 %v112
    %306 = vmatprep.subr.mxu0 0.0
    %307 = vmatpush2.msra.mxu0 %v111
    %308 = vmatprep.subr.mxu0 0.0
    %309 = vmatpush2.msra.mxu0 %v110
    %310 = vmatprep.subr.mxu0 0.0
    %311 = vmatpush2.msra.mxu0 %v109
    %312 = vmatprep.subr.mxu0 0.0
    %313 = vmatpush2.msra.mxu0 %v108
    %314 = vmatprep.subr.mxu0 0.0
    %315 = vmatpush2.msra.mxu0 %v107
    %316 = vmatprep.subr.mxu0 0.0
    %317 = vmatpush2.msra.mxu0 %v106
    %318 = vmatprep.subr.mxu0 0.0
    %319 = vmatpush2.msra.mxu0 %v105
    %320 = vmatprep.subr.mxu0 0.0
    %321 = vmatpush2.msra.mxu0 %v104
    %322 = vmatprep.subr.mxu0 0.0
    %323 = vmatpush2.msra.mxu0 %v103
    %324 = vmatprep.subr.mxu0 0.0
    %325 = vmatpush2.msra.mxu0 %v102
    %326 = vmatprep.subr.mxu0 0.0
    %327 = vmatpush2.msra.mxu0 %v101
    %328 = vmatprep.mubr.f32.mxu0 %v20
    %329 = vmatmul.mubr.f32.gmra.mxu0 %v19
    %v330 = vpop.f32.mrf.mxu0
    %v331 = vadd.f32 %v261, %v330
    %v332 = vpop.f32.mrf.mxu0
    %333 = vdwg.mxu0
    %334 = vst [vmem:[#allocation2] sm:$0xff] %v331
    // Predicated region
    $region14: #{patch_embed.1} parent=1 // pred_check
      _
    $region15: #{patch_embed.1} parent=1 // pred_check_branch
      %336 = sbr.rel (0) target = $region17
    $region16: #{patch_embed.1} parent=1 // pred_region
      %s338 = ssub.s32 128, 128
      %339 = vsyncadd [#allocation3], %s338
      %s341 = sshll.u32 [#allocation2], 4
      %s342 = int_to_ptr.vmem [resolvable:$true] %s341
      %344 = dma.vmem_to_hbm [thread:$0]  %s342, 128, %s3, [#allocation3]
    $region17: #{patch_embed.1} parent=1 // pred_fallthru
      _
    // Predicated region
    $region18: #{patch_embed.1} parent=1 // pred_check
      _
    $region19: #{patch_embed.1} parent=1 // pred_check_branch
      %346 = sbr.rel (0) target = $region21
    $region20: #{patch_embed.1} parent=1 // pred_region
      %347 = dma.done [#allocation3], 128
    $region21: #{patch_embed.1} parent=1 // pred_fallthru
      _
    %348 = vsyncpa [#allocation3], 1

</llo_original>
